<compile_context>
chip_gen: v7x
topology: tpu7x:2x2x1
jax: 0.10.0
libtpu: 0.0.40
codegen_flags: <defaults>
</compile_context>

<pallas_src>
import jax
import jax.numpy as jnp
from jax.experimental import pallas as pl
from jax.experimental.pallas import tpu as pltpu


LANE = 128     # lane width (last dim of a vreg)
SUBLANE = 8    # f32 sublane width (second-last dim)


def _round_up(n, k):
    return ((n + k - 1) // k) * k


# ----------------------------- Pallas kernel ---------------------------------

def batchnorm_fwd_kernel(u_ref, a_ref, c_ref, o_ref):
    # o = u * a + c, computed in f32 regardless of the I/O dtype.
    u = u_ref[...].astype(jnp.float32)
    o_ref[...] = (u * a_ref[...] + c_ref[...]).astype(o_ref.dtype)


def batchnorm_forward(u, w, b, m, v, eps=1e-5, *, tile_b=None):
    """u: (B, D) -> (B, D) in u's dtype.  Matches BatchNorm.forward (eval or train)."""
    B, D = u.shape
    out_dtype = u.dtype

    # Fold the four parameter vectors into two f32 rows (done once, O(D)).
    a = jnp.exp(-w.astype(jnp.float32)) * jnp.sqrt(v.astype(jnp.float32) + eps)
    c = m.astype(jnp.float32) - b.astype(jnp.float32) * a
    a = a.reshape(1, D)
    c = c.reshape(1, D)

    if tile_b is None:
        # 2 streamed arrays (u, out) x 2 pipeline buffers, sized to a ~32 MiB
        # VMEM budget.  Use the lane-padded row width for the footprint since
        # VMEM tiles are (8, 128) internally.
        itemsize = jnp.dtype(out_dtype).itemsize
        row_bytes = _round_up(D, LANE) * itemsize
        budget = 32 << 20
        tile_b = budget // (4 * row_bytes)
        tile_b = max(SUBLANE, min(tile_b, 4096))
        tile_b = (tile_b // SUBLANE) * SUBLANE
    if tile_b >= B:
        tile_b = B                      # single block == full array (always legal)
    grid = (pl.cdiv(B, tile_b),)        # ragged final batch tile is masked by Pallas

    x_spec = pl.BlockSpec((tile_b, D), lambda i: (i, 0))   # streamed per grid step
    p_spec = pl.BlockSpec((1, D), lambda i: (0, 0))        # resident parameter rows

    return pl.pallas_call(
        batchnorm_fwd_kernel,
        out_shape=jax.ShapeDtypeStruct((B, D), out_dtype),
        grid=grid,
        in_specs=[x_spec, p_spec, p_spec],
        out_specs=x_spec,
        compiler_params=pltpu.CompilerParams(
            dimension_semantics=("parallel",),   # megacore-shard batch on v7x
            vmem_limit_bytes=48 << 20),          # above v5e(16MiB)/v6e-v7x(32MiB) defaults
    )(u, a, c)


# TODO(synk): BatchNorm.inverse / logdetJ with training-mode running-stat updates
# (in-place buffer mutation of self.m / self.v) are stateful and not part of the
# requested forward pass; only forward() is kernelized here.


# ----------------------------- pure-JAX reference ----------------------------

def batchnorm_forward_ref(u, w, b, m, v, eps=1e-5):
    return (u - b) * jnp.exp(-w) * jnp.sqrt(v + eps) + m


# ----------------------------- main -------------------------------------------

if __name__ == "__main__":
    eps = 1e-5
    key = jax.random.PRNGKey(0)

    # --- shape from the module docstring: D = 5, u = torch.randn(10, D) -------
    D, batch = 5, 10
    k_u, k_w, k_b, k_m, k_v = jax.random.split(key, 5)
    u = jax.random.normal(k_u, (batch, D), jnp.float32)
    # Parameters / running buffers (module inits w=b=m=0, v=1; use nontrivial
    # values to exercise the arithmetic — forward semantics are identical).
    w = 0.1 * jax.random.normal(k_w, (D,), jnp.float32)
    b = 0.1 * jax.random.normal(k_b, (D,), jnp.float32)
    m = jax.random.normal(k_m, (D,), jnp.float32)
    v = jnp.abs(jax.random.normal(k_v, (D,), jnp.float32)) + 0.5

    out = jax.block_until_ready(batchnorm_forward(u, w, b, m, v, eps))
    ref = batchnorm_forward_ref(u, w, b, m, v, eps)
    assert out.shape == (batch, D)
    assert out.dtype == jnp.float32
    assert jnp.allclose(out, ref, atol=1e-5, rtol=1e-5), "mismatch vs reference (small)"

    # --- multi-tile / ragged-tail exercise: B % tile_b != 0, D % 128 != 0 -----
    B2, D2 = 300, 257
    k2 = jax.random.split(key, 6)
    u2 = jax.random.normal(k2[0], (B2, D2), jnp.float32)
    w2 = 0.1 * jax.random.normal(k2[1], (D2,), jnp.float32)
    b2 = 0.1 * jax.random.normal(k2[2], (D2,), jnp.float32)
    m2 = jax.random.normal(k2[3], (D2,), jnp.float32)
    v2 = jnp.abs(jax.random.normal(k2[4], (D2,), jnp.float32)) + 0.5
    out2 = jax.block_until_ready(batchnorm_forward(u2, w2, b2, m2, v2, eps, tile_b=64))
    ref2 = batchnorm_forward_ref(u2, w2, b2, m2, v2, eps)
    assert jnp.allclose(out2, ref2, atol=1e-5, rtol=1e-5), "mismatch vs reference (ragged)"

    # --- bf16 I/O path (caller dtype preserved at the HBM boundary) -----------
    u3 = u2.astype(jnp.bfloat16)
    out3 = jax.block_until_ready(batchnorm_forward(u3, w2, b2, m2, v2, eps, tile_b=64))
    assert out3.dtype == jnp.bfloat16
    ref3 = batchnorm_forward_ref(u3.astype(jnp.float32), w2, b2, m2, v2, eps)
    assert jnp.allclose(out3.astype(jnp.float32), ref3, atol=5e-2, rtol=5e-2), \
        "mismatch vs reference (bf16)"

    print("KERNEL_OK")
</pallas_src>

<mosaic_0001>
module attributes {stable_mosaic.version = 11 : i64} {
  func.func @batchnorm_fwd_kernel(%arg0: i32, %arg1: memref<10x5xf32, #tpu.memory_space<vmem>>, %arg2: memref<1x5xf32, #tpu.memory_space<vmem>>, %arg3: memref<1x5xf32, #tpu.memory_space<vmem>>, %arg4: memref<10x5xf32, #tpu.memory_space<vmem>>) attributes {dimension_semantics = [#tpu.dimension_semantics<parallel>], iteration_bounds = array<i64: 1>, scalar_prefetch = 0 : i64, scratch_operands = 0 : i64, tpu.core_type = #tpu.core_type<tc>, window_params = [{transform_indices = @transform_0, window_bounds = array<i64: 10, 5>}, {pipeline_mode = #tpu.pipeline_mode<synchronous>, transform_indices = @transform_1, window_bounds = array<i64: 1, 5>}, {pipeline_mode = #tpu.pipeline_mode<synchronous>, transform_indices = @transform_2, window_bounds = array<i64: 1, 5>}, {transform_indices = @transform_3, window_bounds = array<i64: 10, 5>}]} {
    %c0 = arith.constant 0 : index
    %c0_0 = arith.constant 0 : index
    %0 = vector.load %arg1[%c0, %c0_0] : memref<10x5xf32, #tpu.memory_space<vmem>>, vector<10x5xf32>
    %c0_1 = arith.constant 0 : index
    %c0_2 = arith.constant 0 : index
    %1 = vector.load %arg2[%c0_1, %c0_2] : memref<1x5xf32, #tpu.memory_space<vmem>>, vector<1x5xf32>
    %2 = vector.broadcast %1 : vector<1x5xf32> to vector<10x5xf32>
    %3 = arith.mulf %0, %2 : vector<10x5xf32>
    %c0_3 = arith.constant 0 : index
    %c0_4 = arith.constant 0 : index
    %4 = vector.load %arg3[%c0_3, %c0_4] : memref<1x5xf32, #tpu.memory_space<vmem>>, vector<1x5xf32>
    %5 = vector.broadcast %4 : vector<1x5xf32> to vector<10x5xf32>
    %6 = arith.addf %3, %5 : vector<10x5xf32>
    %c0_5 = arith.constant 0 : index
    %c0_6 = arith.constant 0 : index
    %7 = vector.load %arg4[%c0_5, %c0_6] : memref<10x5xf32, #tpu.memory_space<vmem>>, vector<10x5xf32>
    tpu.vector_store %arg4[%c0_5, %c0_6], %6 {strides = array<i32>} : memref<10x5xf32, #tpu.memory_space<vmem>>, vector<10x5xf32>,
    return
  }
  func.func @transform_0(%arg0: i32) -> (i32, i32) {
    %c0_i32 = arith.constant 0 : i32
    %c0_i32_0 = arith.constant 0 : i32
    return %arg0, %c0_i32 : i32, i32
  }
  func.func @transform_1(%arg0: i32) -> (i32, i32) {
    %c0_i32 = arith.constant 0 : i32
    %c0_i32_0 = arith.constant 0 : i32
    %c0_i32_1 = arith.constant 0 : i32
    return %c0_i32, %c0_i32_0 : i32, i32
  }
  func.func @transform_2(%arg0: i32) -> (i32, i32) {
    %c0_i32 = arith.constant 0 : i32
    %c0_i32_0 = arith.constant 0 : i32
    %c0_i32_1 = arith.constant 0 : i32
    return %c0_i32, %c0_i32_0 : i32, i32
  }
  func.func @transform_3(%arg0: i32) -> (i32, i32) {
    %c0_i32 = arith.constant 0 : i32
    %c0_i32_0 = arith.constant 0 : i32
    return %arg0, %c0_i32 : i32, i32
  }
}

</mosaic_0001>

<llo_original>
// kernel: tpu_custom_call.1
$region0: #{tpu_custom_call.1}
  #allocation0 [shape = 'u32[]', space=smem, size = 0x4, offset = 0x4, fixed_abs, tag = 'smem constant byte address 0x4 - core index']
  #allocation1 [shape = 'u32[144,128]{1,0:T(1,128)}', space=vmem, size = 0x12000, scoped, tag = 'internal scratch']
  %s0 = inlined_call_operand.vmem [shape: f32[10,5], index: 0, kind: input, shape index: {}]
  %s1 = inlined_call_operand.vmem [shape: f32[1,5], index: 1, kind: input, shape index: {}]
  %s2 = inlined_call_operand.vmem [shape: f32[1,5], index: 2, kind: input, shape index: {}]
  %s3 = inlined_call_operand.vmem [shape: f32[10,5], index: 3, kind: output, shape index: {}]
  %s4 = sld [smem:[#allocation0]]
  $region22: #{tpu_custom_call.1} parent=0
    _
  %s6 = ssub.s32 1, %s4
  %s7 = scalar_select 0, %s6, %s4
  // Predicated region
  $region2: #{tpu_custom_call.1} parent=0 // pred_check
    _
  $region3: #{tpu_custom_call.1} parent=0 // pred_check_branch
    %9 = sbr.rel (0) target = $region5
  $region4: #{tpu_custom_call.1} parent=0 // pred_region
    _
  $region5: #{tpu_custom_call.1} parent=0 // pred_fallthru
    _
  // Predicated region
  $region6: #{tpu_custom_call.1} parent=0 // pred_check
    _
  $region7: #{tpu_custom_call.1} parent=0 // pred_check_branch
    %11 = sbr.rel (0) target = $region9
  $region8: #{tpu_custom_call.1} parent=0 // pred_region
    _
  $region9: #{tpu_custom_call.1} parent=0 // pred_fallthru
    _
  // Predicated region
  $region10: #{tpu_custom_call.1} parent=0 // pred_check
    _
  $region11: #{tpu_custom_call.1} parent=0 // pred_check_branch
    %13 = sbr.rel (0) target = $region13
  $region12: #{tpu_custom_call.1} parent=0 // pred_region
    _
  $region13: #{tpu_custom_call.1} parent=0 // pred_fallthru
    _
  %v14 = vld [vmem:[%s0] sm:$0xff]
  %v15 = vld [vmem:[%s0 + $0x8] sm:$0x3]
  %v16 = vld [vmem:[%s1] sm:$0x1]
  %v18 = vlaneseq
  %v19 = vshrl.u32 %v18, 7
  %v20 = vsub.s32 0, %v19
  %v21 = vrot.slane %v16, %v20
  %v23 = vmul.f32 %v14, %v21
  %v24 = vmul.f32 %v15, %v21
  %v25 = vld [vmem:[%s2] sm:$0x1]
  %v27 = vlaneseq
  %v28 = vshrl.u32 %v27, 7
  %v29 = vsub.s32 0, %v28
  %v30 = vrot.slane %v25, %v29
  %v32 = vadd.f32 %v23, %v30
  %v33 = vadd.f32 %v24, %v30
  %vm34 = vcmask 39936
  %35 = vst.msk [vmem:[%s3] sm:$0xff] %vm34, %v32
  %vm36 = vcmask 33792
  %37 = vst.msk [vmem:[%s3 + $0x8] sm:$0x3] %vm36, %v33
  // Predicated region
  $region14: #{tpu_custom_call.1} parent=0 // pred_check
    _
  $region15: #{tpu_custom_call.1} parent=0 // pred_check_branch
    %39 = sbr.rel (0) target = $region17
  $region16: #{tpu_custom_call.1} parent=0 // pred_region
    _
  $region17: #{tpu_custom_call.1} parent=0 // pred_fallthru
    _
  // Predicated region
  $region18: #{tpu_custom_call.1} parent=0 // pred_check
    _
  $region19: #{tpu_custom_call.1} parent=0 // pred_check_branch
    %41 = sbr.rel (0) target = $region21
  $region20: #{tpu_custom_call.1} parent=0 // pred_region
    _
  $region21: #{tpu_custom_call.1} parent=0 // pred_fallthru
    _

</llo_original>
